<compile_context>
chip_gen: v7x
topology: tpu7x:2x2x1
jax: 0.10.0
libtpu: 0.0.40
codegen_flags: <defaults>
</compile_context>

<pallas_src>
import functools
import math

import jax
import jax.numpy as jnp
from jax import lax
from jax.experimental import pallas as pl
from jax.experimental.pallas import tpu as pltpu


# ----------------------------------------------------------------------------- kernels


def _norm_kernel(x_ref, scale_ref, o_ref, *, eps):
    """General path: one feature vector per tile row (dim arbitrary)."""
    x = x_ref[...].astype(jnp.float32)                     # (bm, dim)
    ss = jnp.sum(x * x, axis=-1, keepdims=True)            # (bm, 1)
    inv = 1.0 / jnp.maximum(jnp.sqrt(ss), eps)             # clamp(||x||, eps) ^ -1
    o_ref[...] = (x * inv * scale_ref[...]).astype(o_ref.dtype)


def _norm_folded_kernel(x_ref, scale_ref, seg_ref, segt_ref, o_ref, *, eps):
    """Lane-dense path for dim < 128: k feature vectors folded into 128 lanes.

    Segment sums go through the (otherwise idle) MXU with a block-diagonal ones
    matrix; the store is a single unmasked full-width write.
    """
    x = x_ref[...].astype(jnp.float32)                     # (bm, 128)
    ss = jnp.dot(x * x, seg_ref[...],                      # (bm, k) segment sums
                 preferred_element_type=jnp.float32,
                 precision=lax.Precision.HIGHEST)
    inv = 1.0 / jnp.maximum(jnp.sqrt(ss), eps)             # (bm, k), EUP/VPU column
    inv_full = jnp.dot(inv, segt_ref[...],                 # broadcast back to 128 lanes
                       preferred_element_type=jnp.float32,
                       precision=lax.Precision.HIGHEST)
    o_ref[...] = (x * inv_full * scale_ref[...]).astype(o_ref.dtype)


# ----------------------------------------------------------------------------- tiling


def _vmem_capacity_bytes():
    try:
        return int(pltpu.get_tpu_info().vmem_capacity_bytes)
    except Exception:
        return 64 * 1024 * 1024  # conservative (v7x per-TC physical VMEM)


def _choose_block_rows(rows, width, itemsize, vmem_cap):
    """Largest dtype-aligned row tile whose total live VMEM footprint fits budget."""
    if itemsize >= 4:
        align = 8
    elif itemsize == 2:
        align = 16
    else:
        align = 32
    if rows <= align:
        return rows                                        # single full block

    # Generation-aware budget for ALL live buffers: ~40% of per-core VMEM
    # (~25 MiB on v7x's 64 MiB/TC), capped at 48 MiB on 128 MiB-class chips.
    budget = min(int(vmem_cap * 0.40), 48 * 1024 * 1024)
    # in dbl-buf + out dbl-buf + ~3 tiles of f32 upcast intermediates.
    per_row = 4 * width * itemsize + 3 * width * 4
    max_rows = max(align, budget // max(1, per_row))
    max_rows = max(align, (max_rows // align) * align)

    block = min(rows, max_rows)
    block = max(align, (block // align) * align)

    if block >= rows:
        # Whole problem fits in one step: split into 2 even steps when there is
        # enough work so v7x's two TensorCores both get a share.
        if rows >= 4 * align:
            block = ((pl.cdiv(rows, 2) + align - 1) // align) * align
        return block

    # Round to an EVEN number of grid steps (v7x has 2 TCs; an odd grid leaves
    # one core idle on the last step).  Best effort within the VMEM budget.
    steps = pl.cdiv(rows, block)
    if steps % 2 == 1:
        for s in range(steps + 1, steps + 64, 2):
            cand = max(align, ((pl.cdiv(rows, s) + align - 1) // align) * align)
            if cand <= max_rows and pl.cdiv(rows, cand) % 2 == 0:
                block = cand
                break
    return block


# ----------------------------------------------------------------------------- wrapper


def norm(x, scale, eps=1e-8, block_rows=None):
    """scale * x / x.norm(2, dim=-1, keepdim=True).clamp(min=eps)"""
    orig_shape = x.shape
    dim = orig_shape[-1]
    rows = math.prod(orig_shape[:-1]) if len(orig_shape) > 1 else 1
    itemsize = jnp.dtype(x.dtype).itemsize
    x2 = x.reshape(rows, dim)

    # scale is a (dim,) parameter or a python scalar (weight_scaling=False).
    scale_f32 = jnp.broadcast_to(jnp.asarray(scale, jnp.float32), (dim,))

    vmem_cap = _vmem_capacity_bytes()

    # Lane-dense fold when dim is a divisor of 128 (ragged rows handled by padding).
    k = 128 // dim if (0 < dim < 128 and 128 % dim == 0) else 1
    folded = k > 1
    rows_kernel = rows

    if folded:
        rem = rows % k
        if rem:
            # Pad a handful of zero rows so the fold stays lane-dense (full-width
            # unmasked stores); padded rows are finite and sliced off afterwards.
            pad = k - rem
            x2 = jnp.concatenate([x2, jnp.zeros((pad, dim), x2.dtype)], axis=0)
            rows_kernel = rows + pad
        width = 128
        rows_eff = rows_kernel // k
        x2 = x2.reshape(rows_eff, width)                   # free row-major merge
        scale_in = jnp.tile(scale_f32, k).reshape(1, width)
        # (128, k) block-diagonal ones matrix mapping lanes -> segment.
        lane_seg = jnp.arange(width, dtype=jnp.int32)[:, None] // dim
        seg = (lane_seg == jnp.arange(k, dtype=jnp.int32)[None, :]).astype(jnp.float32)
        seg_t = seg.T                                      # (k, 128)
        kernel = functools.partial(_norm_folded_kernel, eps=float(eps))
        extra_inputs = (seg, seg_t)
        extra_specs = [pl.BlockSpec((width, k), lambda i: (0, 0)),
                       pl.BlockSpec((k, width), lambda i: (0, 0))]
    else:
        width = dim
        rows_eff = rows
        scale_in = scale_f32.reshape(1, dim)
        kernel = functools.partial(_norm_kernel, eps=float(eps))
        extra_inputs = ()
        extra_specs = []

    bm = block_rows if block_rows is not None else _choose_block_rows(
        rows_eff, width, itemsize, vmem_cap)
    grid = (pl.cdiv(rows_eff, bm),)                        # ragged last block is masked

    # Footprint-derived VMEM limit (in/out double buffers + f32 temporaries + slack).
    per_row = 4 * width * itemsize + 3 * width * 4
    footprint = bm * per_row + (1 << 20)
    vmem_limit = int(min(max(footprint, 4 << 20), vmem_cap))
    # TODO(synk): add a feature-axis (dim) two-pass fallback for extremely large dim;
    # currently a single (align, dim) tile must fit within the VMEM limit.

    cost = pl.CostEstimate(
        flops=4 * rows * dim,
        transcendentals=rows,
        bytes_accessed=2 * rows * dim * itemsize,
    )

    out = pl.pallas_call(
        kernel,
        out_shape=jax.ShapeDtypeStruct((rows_eff, width), x.dtype),
        grid_spec=pltpu.PrefetchScalarGridSpec(
            num_scalar_prefetch=0,
            grid=grid,
            in_specs=[
                pl.BlockSpec((bm, width), lambda i: (i, 0)),
                pl.BlockSpec((1, scale_in.shape[1]), lambda i: (0, 0)),  # resident scale
                *extra_specs,                                            # resident seg mats
            ],
            out_specs=pl.BlockSpec((bm, width), lambda i: (i, 0)),
        ),
        compiler_params=pltpu.CompilerParams(
            dimension_semantics=("parallel",),
            vmem_limit_bytes=vmem_limit,
        ),
        cost_estimate=cost,
    )(x2, scale_in, *extra_inputs)

    if folded:
        out = out.reshape(rows_kernel, dim)
        if rows_kernel != rows:
            out = out[:rows]
    return out.reshape(orig_shape)


def norm_reference(x, scale, eps=1e-8):
    xf = x.astype(jnp.float32)
    n = jnp.sqrt(jnp.sum(xf * xf, axis=-1, keepdims=True))
    return (jnp.asarray(scale, jnp.float32) * xf / jnp.maximum(n, eps)).astype(x.dtype)


if __name__ == "__main__":
    key = jax.random.PRNGKey(0)
    eps = 1e-8

    # 1) Folded lane-dense path (dim=32 < 128), rows divide evenly by k=4.
    batch, seq, dim = 2, 8, 32
    x = jax.random.normal(key, (batch, seq, dim), dtype=jnp.float32)
    scale = jnp.ones((dim,), dtype=jnp.float32)   # matches nn.Parameter(torch.ones(dim))
    out = jax.block_until_ready(norm(x, scale, eps))
    ref = norm_reference(x, scale, eps)
    assert out.shape == x.shape
    assert jnp.allclose(out, ref, atol=1e-5, rtol=1e-5), "mismatch (folded path)"

    # 2) General path with a ragged row grid: dim=128, rows=15.
    x_b = jax.random.normal(jax.random.PRNGKey(1), (3, 5, 128), dtype=jnp.float32)
    scale_b = jnp.ones((128,), dtype=jnp.float32)
    out_b = jax.block_until_ready(norm(x_b, scale_b, eps))
    ref_b = norm_reference(x_b, scale_b, eps)
    assert jnp.allclose(out_b, ref_b, atol=1e-5, rtol=1e-5), "mismatch (general path)"

    # 3) Folded path with row padding: rows=15 is not a multiple of k=4.
    x_c = jax.random.normal(jax.random.PRNGKey(2), (3, 5, 32), dtype=jnp.float32)
    scale_c = jax.random.normal(jax.random.PRNGKey(3), (32,), dtype=jnp.float32)
    out_c = jax.block_until_ready(norm(x_c, scale_c, eps))
    ref_c = norm_reference(x_c, scale_c, eps)
    assert jnp.allclose(out_c, ref_c, atol=1e-5, rtol=1e-5), "mismatch (padded fold)"

    # 4) weight_scaling=False (python scalar scale) with bf16 input, dim=64 (k=2).
    x_d = jax.random.normal(jax.random.PRNGKey(4), (2, 8, 64), dtype=jnp.bfloat16)
    out_d = jax.block_until_ready(norm(x_d, 1, eps))
    ref_d = norm_reference(x_d, 1, eps)
    assert out_d.dtype == jnp.bfloat16
    assert jnp.allclose(out_d.astype(jnp.float32), ref_d.astype(jnp.float32),
                        atol=2e-2, rtol=2e-2), "mismatch (scalar scale / bf16)"

    print("KERNEL_OK")
</pallas_src>

<mosaic_0001>
module attributes {stable_mosaic.version = 11 : i64} {
  func.func @_norm_folded_kernel(%arg0: i32, %arg1: memref<4x128xf32, #tpu.memory_space<vmem>>, %arg2: memref<1x128xf32, #tpu.memory_space<vmem>>, %arg3: memref<128x4xf32, #tpu.memory_space<vmem>>, %arg4: memref<4x128xf32, #tpu.memory_space<vmem>>, %arg5: memref<4x128xf32, #tpu.memory_space<vmem>>) attributes {dimension_semantics = [#tpu.dimension_semantics<parallel>], iteration_bounds = array<i64: 1>, scalar_prefetch = 0 : i64, scratch_operands = 0 : i64, tpu.core_type = #tpu.core_type<tc>, window_params = [{transform_indices = @transform_0, window_bounds = array<i64: 4, 128>}, {pipeline_mode = #tpu.pipeline_mode<synchronous>, transform_indices = @transform_1, window_bounds = array<i64: 1, 128>}, {pipeline_mode = #tpu.pipeline_mode<synchronous>, transform_indices = @transform_2, window_bounds = array<i64: 128, 4>}, {pipeline_mode = #tpu.pipeline_mode<synchronous>, transform_indices = @transform_3, window_bounds = array<i64: 4, 128>}, {transform_indices = @transform_4, window_bounds = array<i64: 4, 128>}]} {
    %c0 = arith.constant 0 : index
    %c0_0 = arith.constant 0 : index
    %0 = vector.load %arg1[%c0, %c0_0] : memref<4x128xf32, #tpu.memory_space<vmem>>, vector<4x128xf32>
    %1 = arith.mulf %0, %0 : vector<4x128xf32>
    %c0_1 = arith.constant 0 : index
    %c0_2 = arith.constant 0 : index
    %2 = vector.load %arg3[%c0_1, %c0_2] : memref<128x4xf32, #tpu.memory_space<vmem>>, vector<128x4xf32>
    %cst = arith.constant dense<0.000000e+00> : vector<4x4xf32>
    %3 = tpu.matmul %1, %2, %cst {dimension_numbers = #tpu.dot_dimension_numbers<[1], [0], [0], [1], [0, 0, 1, 1], [], []>, precision = #tpu.contract_precision<fp32>} : vector<4x128xf32>, vector<128x4xf32>, vector<4x4xf32> -> vector<4x4xf32>
    %4 = math.sqrt %3 : vector<4x4xf32>
    %cst_3 = arith.constant 9.99999993E-9 : f32
    %5 = vector.broadcast %cst_3 : f32 to vector<4x4xf32>
    %6 = arith.maximumf %4, %5 : vector<4x4xf32>
    %cst_4 = arith.constant 1.000000e+00 : f32
    %7 = vector.broadcast %cst_4 : f32 to vector<4x4xf32>
    %8 = arith.divf %7, %6 : vector<4x4xf32>
    %c0_5 = arith.constant 0 : index
    %c0_6 = arith.constant 0 : index
    %9 = vector.load %arg4[%c0_5, %c0_6] : memref<4x128xf32, #tpu.memory_space<vmem>>, vector<4x128xf32>
    %cst_7 = arith.constant dense<0.000000e+00> : vector<4x128xf32>
    %10 = tpu.matmul %8, %9, %cst_7 {dimension_numbers = #tpu.dot_dimension_numbers<[1], [0], [0], [1], [0, 0, 1, 1], [], []>, precision = #tpu.contract_precision<fp32>} : vector<4x4xf32>, vector<4x128xf32>, vector<4x128xf32> -> vector<4x128xf32>
    %11 = arith.mulf %0, %10 : vector<4x128xf32>
    %c0_8 = arith.constant 0 : index
    %c0_9 = arith.constant 0 : index
    %12 = vector.load %arg2[%c0_8, %c0_9] : memref<1x128xf32, #tpu.memory_space<vmem>>, vector<1x128xf32>
    %13 = vector.broadcast %12 : vector<1x128xf32> to vector<4x128xf32>
    %14 = arith.mulf %11, %13 : vector<4x128xf32>
    %c0_10 = arith.constant 0 : index
    %c0_11 = arith.constant 0 : index
    %15 = vector.load %arg5[%c0_10, %c0_11] : memref<4x128xf32, #tpu.memory_space<vmem>>, vector<4x128xf32>
    tpu.vector_store %arg5[%c0_10, %c0_11], %14 {strides = array<i32>} : memref<4x128xf32, #tpu.memory_space<vmem>>, vector<4x128xf32>,
    return
  }
  func.func @transform_0(%arg0: i32) -> (i32, i32) {
    %c0_i32 = arith.constant 0 : i32
    %c0_i32_0 = arith.constant 0 : i32
    return %arg0, %c0_i32 : i32, i32
  }
  func.func @transform_1(%arg0: i32) -> (i32, i32) {
    %c0_i32 = arith.constant 0 : i32
    %c0_i32_0 = arith.constant 0 : i32
    %c0_i32_1 = arith.constant 0 : i32
    return %c0_i32, %c0_i32_0 : i32, i32
  }
  func.func @transform_2(%arg0: i32) -> (i32, i32) {
    %c0_i32 = arith.constant 0 : i32
    %c0_i32_0 = arith.constant 0 : i32
    %c0_i32_1 = arith.constant 0 : i32
    return %c0_i32, %c0_i32_0 : i32, i32
  }
  func.func @transform_3(%arg0: i32) -> (i32, i32) {
    %c0_i32 = arith.constant 0 : i32
    %c0_i32_0 = arith.constant 0 : i32
    %c0_i32_1 = arith.constant 0 : i32
    return %c0_i32, %c0_i32_0 : i32, i32
  }
  func.func @transform_4(%arg0: i32) -> (i32, i32) {
    %c0_i32 = arith.constant 0 : i32
    %c0_i32_0 = arith.constant 0 : i32
    return %arg0, %c0_i32 : i32, i32
  }
}

</mosaic_0001>

<llo_original>
// kernel: tpu_custom_call.1
$region0: #{tpu_custom_call.1}
  #allocation0 [shape = 'u32[]', space=smem, size = 0x4, offset = 0x4, fixed_abs, tag = 'smem constant byte address 0x4 - core index']
  #allocation1 [shape = 'u32[144,128]{1,0:T(1,128)}', space=vmem, size = 0x12000, scoped, tag = 'internal scratch']
  %s0 = inlined_call_operand.vmem [shape: f32[4,128], index: 0, kind: input, shape index: {}]
  %s1 = inlined_call_operand.vmem [shape: f32[1,128], index: 1, kind: input, shape index: {}]
  %s2 = inlined_call_operand.vmem [shape: f32[128,4], index: 2, kind: input, shape index: {}]
  %s3 = inlined_call_operand.vmem [shape: f32[4,128], index: 3, kind: input, shape index: {}]
  %s4 = inlined_call_operand.hbm [shape: f32[4,128], index: 4, kind: output, shape index: {}]
  %s5 = sld [smem:[#allocation0]]
  $region26: #{tpu_custom_call.1} parent=0
    _
  %s7 = ssub.s32 1, %s5
  %s8 = scalar_select 0, %s7, %s5
  $region1: #{tpu_custom_call.1} parent=0
    #allocation2 [shape = 'u8[2048]{0}', space=vmem, size = 0x800, scoped, tag = 'output window, operand 0, single buffered']
    #allocation3 [shape = 's32[1]{0}', space=sflag, size = 0x4, scoped, tag = 'scoped memory for tpu_custom_call.1']
    %9 = vsyncpa [#allocation3], 0
    // Predicated region
    $region2: #{tpu_custom_call.1} parent=1 // pred_check
      _
    $region3: #{tpu_custom_call.1} parent=1 // pred_check_branch
      %11 = sbr.rel (0) target = $region5
    $region4: #{tpu_custom_call.1} parent=1 // pred_region
      _
    $region5: #{tpu_custom_call.1} parent=1 // pred_fallthru
      _
    // Predicated region
    $region6: #{tpu_custom_call.1} parent=1 // pred_check
      _
    $region7: #{tpu_custom_call.1} parent=1 // pred_check_branch
      %13 = sbr.rel (0) target = $region9
    $region8: #{tpu_custom_call.1} parent=1 // pred_region
      _
    $region9: #{tpu_custom_call.1} parent=1 // pred_fallthru
      _
    // Predicated region
    $region10: #{tpu_custom_call.1} parent=1 // pred_check
      _
    $region11: #{tpu_custom_call.1} parent=1 // pred_check_branch
      %15 = sbr.rel (0) target = $region13
    $region12: #{tpu_custom_call.1} parent=1 // pred_region
      _
    $region13: #{tpu_custom_call.1} parent=1 // pred_fallthru
      _
    // Predicated region
    $region14: #{tpu_custom_call.1} parent=1 // pred_check
      _
    $region15: #{tpu_custom_call.1} parent=1 // pred_check_branch
      %17 = sbr.rel (0) target = $region17
    $region16: #{tpu_custom_call.1} parent=1 // pred_region
      _
    $region17: #{tpu_custom_call.1} parent=1 // pred_fallthru
      _
    %v18 = vld [vmem:[%s0] sm:$0xf]
    %v19 = vmul.f32 %v18, %v18
    %v20 = vld [vmem:[%s2] sm:$0xff]
    %v21 = vld [vmem:[%s2 + $0x8] sm:$0xff]
    %v22 = vld [vmem:[%s2 + $0x10] sm:$0xff]
    %v23 = vld [vmem:[%s2 + $0x18] sm:$0xff]
    %v24 = vld [vmem:[%s2 + $0x20] sm:$0xff]
    %v25 = vld [vmem:[%s2 + $0x28] sm:$0xff]
    %v26 = vld [vmem:[%s2 + $0x30] sm:$0xff]
    %v27 = vld [vmem:[%s2 + $0x38] sm:$0xff]
    %v28 = vld [vmem:[%s2 + $0x40] sm:$0xff]
    %v29 = vld [vmem:[%s2 + $0x48] sm:$0xff]
    %v30 = vld [vmem:[%s2 + $0x50] sm:$0xff]
    %v31 = vld [vmem:[%s2 + $0x58] sm:$0xff]
    %v32 = vld [vmem:[%s2 + $0x60] sm:$0xff]
    %v33 = vld [vmem:[%s2 + $0x68] sm:$0xff]
    %v34 = vld [vmem:[%s2 + $0x70] sm:$0xff]
    %v35 = vld [vmem:[%s2 + $0x78] sm:$0xff]
    %36 = vmatprep.subr.mxu0 0.0
    %v37 = vand.u32 %v20, 4294901760
    %38 = vmatpush1.msra.mxu0 %v37
    %39 = vmatprep.subr.mxu0 0.0
    %v40 = vand.u32 %v21, 4294901760
    %41 = vmatpush1.msra.mxu0 %v40
    %42 = vmatprep.subr.mxu0 0.0
    %v43 = vand.u32 %v22, 4294901760
    %44 = vmatpush1.msra.mxu0 %v43
    %45 = vmatprep.subr.mxu0 0.0
    %v46 = vand.u32 %v23, 4294901760
    %47 = vmatpush1.msra.mxu0 %v46
    %48 = vmatprep.subr.mxu0 0.0
    %v49 = vand.u32 %v24, 4294901760
    %50 = vmatpush1.msra.mxu0 %v49
    %51 = vmatprep.subr.mxu0 0.0
    %v52 = vand.u32 %v25, 4294901760
    %53 = vmatpush1.msra.mxu0 %v52
    %54 = vmatprep.subr.mxu0 0.0
    %v55 = vand.u32 %v26, 4294901760
    %56 = vmatpush1.msra.mxu0 %v55
    %57 = vmatprep.subr.mxu0 0.0
    %v58 = vand.u32 %v27, 4294901760
    %59 = vmatpush1.msra.mxu0 %v58
    %60 = vmatprep.subr.mxu0 0.0
    %v61 = vand.u32 %v28, 4294901760
    %62 = vmatpush1.msra.mxu0 %v61
    %63 = vmatprep.subr.mxu0 0.0
    %v64 = vand.u32 %v29, 4294901760
    %65 = vmatpush1.msra.mxu0 %v64
    %66 = vmatprep.subr.mxu0 0.0
    %v67 = vand.u32 %v30, 4294901760
    %68 = vmatpush1.msra.mxu0 %v67
    %69 = vmatprep.subr.mxu0 0.0
    %v70 = vand.u32 %v31, 4294901760
    %71 = vmatpush1.msra.mxu0 %v70
    %72 = vmatprep.subr.mxu0 0.0
    %v73 = vand.u32 %v32, 4294901760
    %74 = vmatpush1.msra.mxu0 %v73
    %75 = vmatprep.subr.mxu0 0.0
    %v76 = vand.u32 %v33, 4294901760
    %77 = vmatpush1.msra.mxu0 %v76
    %78 = vmatprep.subr.mxu0 0.0
    %v79 = vand.u32 %v34, 4294901760
    %80 = vmatpush1.msra.mxu0 %v79
    %81 = vmatprep.subr.mxu0 0.0
    %v82 = vand.u32 %v35, 4294901760
    %83 = vmatpush1.msra.mxu0 %v82
    %84 = vmatprep.subr.mxu0 0.0
    %85 = vmatpush1.msra.mxu0 0.0
    %86 = vmatprep.subr.mxu0 0.0
    %87 = vmatpush1.msra.mxu0 0.0
    %88 = vmatprep.subr.mxu0 0.0
    %89 = vmatpush1.msra.mxu0 0.0
    %90 = vmatprep.subr.mxu0 0.0
    %91 = vmatpush1.msra.mxu0 0.0
    %92 = vmatprep.subr.mxu0 0.0
    %93 = vmatpush1.msra.mxu0 0.0
    %94 = vmatprep.subr.mxu0 0.0
    %95 = vmatpush1.msra.mxu0 0.0
    %96 = vmatprep.subr.mxu0 0.0
    %97 = vmatpush1.msra.mxu0 0.0
    %98 = vmatprep.subr.mxu0 0.0
    %99 = vmatpush1.msra.mxu0 0.0
    %100 = vmatprep.subr.mxu0 0.0
    %101 = vmatpush1.msra.mxu0 0.0
    %102 = vmatprep.subr.mxu0 0.0
    %103 = vmatpush1.msra.mxu0 0.0
    %104 = vmatprep.subr.mxu0 0.0
    %105 = vmatpush1.msra.mxu0 0.0
    %106 = vmatprep.subr.mxu0 0.0
    %107 = vmatpush1.msra.mxu0 0.0
    %108 = vmatprep.subr.mxu0 0.0
    %109 = vmatpush1.msra.mxu0 0.0
    %110 = vmatprep.subr.mxu0 0.0
    %111 = vmatpush1.msra.mxu0 0.0
    %112 = vmatprep.subr.mxu0 0.0
    %113 = vmatpush1.msra.mxu0 0.0
    %114 = vmatprep.subr.mxu0 0.0
    %115 = vmatpush1.msra.mxu0 0.0
    %116 = vmatprep.mubr.f32.mxu0 0.0
    %v117 = vand.u32 %v19, 4294901760
    %v118 = vsub.f32 %v19, %v117
    %v119 = vand.u32 %v118, 4294901760
    %v120 = vsub.f32 %v118, %v119
    %v121 = vand.u32 %v120, 4294901760
    %122 = vmatmul.mubr.f32.gmra.mrb[0].mxu0 %v121
    %v123 = vpop.f32.mrb[0].mxu0
    %v124 = vadd.f32 0.0, %v123
    %v125 = vpop.f32.mrb[0].mxu0
    %126 = vdwg.mxu0
    %127 = vmatprep.subr.mxu0 0.0
    %v128 = vand.u32 %v20, 4294901760
    %v129 = vsub.f32 %v20, %v128
    %v130 = vand.u32 %v129, 4294901760
    %v131 = vsub.f32 %v129, %v130
    %v132 = vand.u32 %v131, 4294901760
    %133 = vmatpush1.msra.mxu0 %v132
    %134 = vmatprep.subr.mxu0 0.0
    %v135 = vand.u32 %v21, 4294901760
    %v136 = vsub.f32 %v21, %v135
    %v137 = vand.u32 %v136, 4294901760
    %v138 = vsub.f32 %v136, %v137
    %v139 = vand.u32 %v138, 4294901760
    %140 = vmatpush1.msra.mxu0 %v139
    %141 = vmatprep.subr.mxu0 0.0
    %v142 = vand.u32 %v22, 4294901760
    %v143 = vsub.f32 %v22, %v142
    %v144 = vand.u32 %v143, 4294901760
    %v145 = vsub.f32 %v143, %v144
    %v146 = vand.u32 %v145, 4294901760
    %147 = vmatpush1.msra.mxu0 %v146
    %148 = vmatprep.subr.mxu0 0.0
    %v149 = vand.u32 %v23, 4294901760
    %v150 = vsub.f32 %v23, %v149
    %v151 = vand.u32 %v150, 4294901760
    %v152 = vsub.f32 %v150, %v151
    %v153 = vand.u32 %v152, 4294901760
    %154 = vmatpush1.msra.mxu0 %v153
    %155 = vmatprep.subr.mxu0 0.0
    %v156 = vand.u32 %v24, 4294901760
    %v157 = vsub.f32 %v24, %v156
    %v158 = vand.u32 %v157, 4294901760
    %v159 = vsub.f32 %v157, %v158
    %v160 = vand.u32 %v159, 4294901760
    %161 = vmatpush1.msra.mxu0 %v160
    %162 = vmatprep.subr.mxu0 0.0
    %v163 = vand.u32 %v25, 4294901760
    %v164 = vsub.f32 %v25, %v163
    %v165 = vand.u32 %v164, 4294901760
    %v166 = vsub.f32 %v164, %v165
    %v167 = vand.u32 %v166, 4294901760
    %168 = vmatpush1.msra.mxu0 %v167
    %169 = vmatprep.subr.mxu0 0.0
    %v170 = vand.u32 %v26, 4294901760
    %v171 = vsub.f32 %v26, %v170
    %v172 = vand.u32 %v171, 4294901760
    %v173 = vsub.f32 %v171, %v172
    %v174 = vand.u32 %v173, 4294901760
    %175 = vmatpush1.msra.mxu0 %v174
    %176 = vmatprep.subr.mxu0 0.0
    %v177 = vand.u32 %v27, 4294901760
    %v178 = vsub.f32 %v27, %v177
    %v179 = vand.u32 %v178, 4294901760
    %v180 = vsub.f32 %v178, %v179
    %v181 = vand.u32 %v180, 4294901760
    %182 = vmatpush1.msra.mxu0 %v181
    %183 = vmatprep.subr.mxu0 0.0
    %v184 = vand.u32 %v28, 4294901760
    %v185 = vsub.f32 %v28, %v184
    %v186 = vand.u32 %v185, 4294901760
    %v187 = vsub.f32 %v185, %v186
    %v188 = vand.u32 %v187, 4294901760
    %189 = vmatpush1.msra.mxu0 %v188
    %190 = vmatprep.subr.mxu0 0.0
    %v191 = vand.u32 %v29, 4294901760
    %v192 = vsub.f32 %v29, %v191
    %v193 = vand.u32 %v192, 4294901760
    %v194 = vsub.f32 %v192, %v193
    %v195 = vand.u32 %v194, 4294901760
    %196 = vmatpush1.msra.mxu0 %v195
    %197 = vmatprep.subr.mxu0 0.0
    %v198 = vand.u32 %v30, 4294901760
    %v199 = vsub.f32 %v30, %v198
    %v200 = vand.u32 %v199, 4294901760
    %v201 = vsub.f32 %v199, %v200
    %v202 = vand.u32 %v201, 4294901760
    %203 = vmatpush1.msra.mxu0 %v202
    %204 = vmatprep.subr.mxu0 0.0
    %v205 = vand.u32 %v31, 4294901760
    %v206 = vsub.f32 %v31, %v205
    %v207 = vand.u32 %v206, 4294901760
    %v208 = vsub.f32 %v206, %v207
    %v209 = vand.u32 %v208, 4294901760
    %210 = vmatpush1.msra.mxu0 %v209
    %211 = vmatprep.subr.mxu0 0.0
    %v212 = vand.u32 %v32, 4294901760
    %v213 = vsub.f32 %v32, %v212
    %v214 = vand.u32 %v213, 4294901760
    %v215 = vsub.f32 %v213, %v214
    %v216 = vand.u32 %v215, 4294901760
    %217 = vmatpush1.msra.mxu0 %v216
    %218 = vmatprep.subr.mxu0 0.0
    %v219 = vand.u32 %v33, 4294901760
    %v220 = vsub.f32 %v33, %v219
    %v221 = vand.u32 %v220, 4294901760
    %v222 = vsub.f32 %v220, %v221
    %v223 = vand.u32 %v222, 4294901760
    %224 = vmatpush1.msra.mxu0 %v223
    %225 = vmatprep.subr.mxu0 0.0
    %v226 = vand.u32 %v34, 4294901760
    %v227 = vsub.f32 %v34, %v226
    %v228 = vand.u32 %v227, 4294901760
    %v229 = vsub.f32 %v227, %v228
    %v230 = vand.u32 %v229, 4294901760
    %231 = vmatpush1.msra.mxu0 %v230
    %232 = vmatprep.subr.mxu0 0.0
    %v233 = vand.u32 %v35, 4294901760
    %v234 = vsub.f32 %v35, %v233
    %v235 = vand.u32 %v234, 4294901760
    %v236 = vsub.f32 %v234, %v235
    %v237 = vand.u32 %v236, 4294901760
    %238 = vmatpush1.msra.mxu0 %v237
    %239 = vmatprep.subr.mxu0 0.0
    %240 = vmatpush1.msra.mxu0 0.0
    %241 = vmatprep.subr.mxu0 0.0
    %242 = vmatpush1.msra.mxu0 0.0
    %243 = vmatprep.subr.mxu0 0.0
    %244 = vmatpush1.msra.mxu0 0.0
    %245 = vmatprep.subr.mxu0 0.0
    %246 = vmatpush1.msra.mxu0 0.0
    %247 = vmatprep.subr.mxu0 0.0
    %248 = vmatpush1.msra.mxu0 0.0
    %249 = vmatprep.subr.mxu0 0.0
    %250 = vmatpush1.msra.mxu0 0.0
    %251 = vmatprep.subr.mxu0 0.0
    %252 = vmatpush1.msra.mxu0 0.0
    %253 = vmatprep.subr.mxu0 0.0
    %254 = vmatpush1.msra.mxu0 0.0
    %255 = vmatprep.subr.mxu0 0.0
    %256 = vmatpush1.msra.mxu0 0.0
    %257 = vmatprep.subr.mxu0 0.0
    %258 = vmatpush1.msra.mxu0 0.0
    %259 = vmatprep.subr.mxu0 0.0
    %260 = vmatpush1.msra.mxu0 0.0
    %261 = vmatprep.subr.mxu0 0.0
    %262 = vmatpush1.msra.mxu0 0.0
    %263 = vmatprep.subr.mxu0 0.0
    %264 = vmatpush1.msra.mxu0 0.0
    %265 = vmatprep.subr.mxu0 0.0
    %266 = vmatpush1.msra.mxu0 0.0
    %267 = vmatprep.subr.mxu0 0.0
    %268 = vmatpush1.msra.mxu0 0.0
    %269 = vmatprep.subr.mxu0 0.0
    %270 = vmatpush1.msra.mxu0 0.0
    %271 = vmatprep.mubr.f32.mxu0 0.0
    %v272 = vand.u32 %v19, 4294901760
    %273 = vmatmul.mubr.f32.gmra.mrb[0].mxu0 %v272
    %v274 = vpop.f32.mrb[0].mxu0
    %v275 = vadd.f32 %v124, %v274
    %v276 = vpop.f32.mrb[0].mxu0
    %277 = vdwg.mxu0
    %278 = vmatprep.subr.mxu0 0.0
    %v279 = vand.u32 %v20, 4294901760
    %v280 = vsub.f32 %v20, %v279
    %281 = vmatpush1.msra.mxu0 %v280
    %282 = vmatprep.subr.mxu0 0.0
    %v283 = vand.u32 %v21, 4294901760
    %v284 = vsub.f32 %v21, %v283
    %285 = vmatpush1.msra.mxu0 %v284
    %286 = vmatprep.subr.mxu0 0.0
    %v287 = vand.u32 %v22, 4294901760
    %v288 = vsub.f32 %v22, %v287
    %289 = vmatpush1.msra.mxu0 %v288
    %290 = vmatprep.subr.mxu0 0.0
    %v291 = vand.u32 %v23, 4294901760
    %v292 = vsub.f32 %v23, %v291
    %293 = vmatpush1.msra.mxu0 %v292
    %294 = vmatprep.subr.mxu0 0.0
    %v295 = vand.u32 %v24, 4294901760
    %v296 = vsub.f32 %v24, %v295
    %297 = vmatpush1.msra.mxu0 %v296
    %298 = vmatprep.subr.mxu0 0.0
    %v299 = vand.u32 %v25, 4294901760
    %v300 = vsub.f32 %v25, %v299
    %301 = vmatpush1.msra.mxu0 %v300
    %302 = vmatprep.subr.mxu0 0.0
    %v303 = vand.u32 %v26, 4294901760
    %v304 = vsub.f32 %v26, %v303
    %305 = vmatpush1.msra.mxu0 %v304
    %306 = vmatprep.subr.mxu0 0.0
    %v307 = vand.u32 %v27, 4294901760
    %v308 = vsub.f32 %v27, %v307
    %309 = vmatpush1.msra.mxu0 %v308
    %310 = vmatprep.subr.mxu0 0.0
    %v311 = vand.u32 %v28, 4294901760
    %v312 = vsub.f32 %v28, %v311
    %313 = vmatpush1.msra.mxu0 %v312
    %314 = vmatprep.subr.mxu0 0.0
    %v315 = vand.u32 %v29, 4294901760
    %v316 = vsub.f32 %v29, %v315
    %317 = vmatpush1.msra.mxu0 %v316
    %318 = vmatprep.subr.mxu0 0.0
    %v319 = vand.u32 %v30, 4294901760
    %v320 = vsub.f32 %v30, %v319
    %321 = vmatpush1.msra.mxu0 %v320
    %322 = vmatprep.subr.mxu0 0.0
    %v323 = vand.u32 %v31, 4294901760
    %v324 = vsub.f32 %v31, %v323
    %325 = vmatpush1.msra.mxu0 %v324
    %326 = vmatprep.subr.mxu0 0.0
    %v327 = vand.u32 %v32, 4294901760
    %v328 = vsub.f32 %v32, %v327
    %329 = vmatpush1.msra.mxu0 %v328
    %330 = vmatprep.subr.mxu0 0.0
    %v331 = vand.u32 %v33, 4294901760
    %v332 = vsub.f32 %v33, %v331
    %333 = vmatpush1.msra.mxu0 %v332
    %334 = vmatprep.subr.mxu0 0.0
    %v335 = vand.u32 %v34, 4294901760
    %v336 = vsub.f32 %v34, %v335
    %337 = vmatpush1.msra.mxu0 %v336
    %338 = vmatprep.subr.mxu0 0.0
    %v339 = vand.u32 %v35, 4294901760
    %v340 = vsub.f32 %v35, %v339
    %341 = vmatpush1.msra.mxu0 %v340
    %342 = vmatprep.subr.mxu0 0.0
    %343 = vmatpush1.msra.mxu0 0.0
    %344 = vmatprep.subr.mxu0 0.0
    %345 = vmatpush1.msra.mxu0 0.0
    %346 = vmatprep.subr.mxu0 0.0
    %347 = vmatpush1.msra.mxu0 0.0
    %348 = vmatprep.subr.mxu0 0.0
    %349 = vmatpush1.msra.mxu0 0.0
    %350 = vmatprep.subr.mxu0 0.0
    %351 = vmatpush1.msra.mxu0 0.0
    %352 = vmatprep.subr.mxu0 0.0
    %353 = vmatpush1.msra.mxu0 0.0
    %354 = vmatprep.subr.mxu0 0.0
    %355 = vmatpush1.msra.mxu0 0.0
    %356 = vmatprep.subr.mxu0 0.0
    %357 = vmatpush1.msra.mxu0 0.0
    %358 = vmatprep.subr.mxu0 0.0
    %359 = vmatpush1.msra.mxu0 0.0
    %360 = vmatprep.subr.mxu0 0.0
    %361 = vmatpush1.msra.mxu0 0.0
    %362 = vmatprep.subr.mxu0 0.0
    %363 = vmatpush1.msra.mxu0 0.0
    %364 = vmatprep.subr.mxu0 0.0
    %365 = vmatpush1.msra.mxu0 0.0
    %366 = vmatprep.subr.mxu0 0.0
    %367 = vmatpush1.msra.mxu0 0.0
    %368 = vmatprep.subr.mxu0 0.0
    %369 = vmatpush1.msra.mxu0 0.0
    %370 = vmatprep.subr.mxu0 0.0
    %371 = vmatpush1.msra.mxu0 0.0
    %372 = vmatprep.subr.mxu0 0.0
    %373 = vmatpush1.msra.mxu0 0.0
    %374 = vmatprep.mubr.f32.mxu0 0.0
    %v375 = vand.u32 %v19, 4294901760
    %v376 = vsub.f32 %v19, %v375
    %377 = vmatmul.mubr.f32.gmra.mrb[0].mxu0 %v376
    %v378 = vpop.f32.mrb[0].mxu0
    %v379 = vadd.f32 %v275, %v378
    %v380 = vpop.f32.mrb[0].mxu0
    %381 = vdwg.mxu0
    %382 = vmatprep.subr.mxu0 0.0
    %v383 = vand.u32 %v20, 4294901760
    %384 = vmatpush1.msra.mxu0 %v383
    %385 = vmatprep.subr.mxu0 0.0
    %v386 = vand.u32 %v21, 4294901760
    %387 = vmatpush1.msra.mxu0 %v386
    %388 = vmatprep.subr.mxu0 0.0
    %v389 = vand.u32 %v22, 4294901760
    %390 = vmatpush1.msra.mxu0 %v389
    %391 = vmatprep.subr.mxu0 0.0
    %v392 = vand.u32 %v23, 4294901760
    %393 = vmatpush1.msra.mxu0 %v392
    %394 = vmatprep.subr.mxu0 0.0
    %v395 = vand.u32 %v24, 4294901760
    %396 = vmatpush1.msra.mxu0 %v395
    %397 = vmatprep.subr.mxu0 0.0
    %v398 = vand.u32 %v25, 4294901760
    %399 = vmatpush1.msra.mxu0 %v398
    %400 = vmatprep.subr.mxu0 0.0
    %v401 = vand.u32 %v26, 4294901760
    %402 = vmatpush1.msra.mxu0 %v401
    %403 = vmatprep.subr.mxu0 0.0
    %v404 = vand.u32 %v27, 4294901760
    %405 = vmatpush1.msra.mxu0 %v404
    %406 = vmatprep.subr.mxu0 0.0
    %v407 = vand.u32 %v28, 4294901760
    %408 = vmatpush1.msra.mxu0 %v407
    %409 = vmatprep.subr.mxu0 0.0
    %v410 = vand.u32 %v29, 4294901760
    %411 = vmatpush1.msra.mxu0 %v410
    %412 = vmatprep.subr.mxu0 0.0
    %v413 = vand.u32 %v30, 4294901760
    %414 = vmatpush1.msra.mxu0 %v413
    %415 = vmatprep.subr.mxu0 0.0
    %v416 = vand.u32 %v31, 4294901760
    %417 = vmatpush1.msra.mxu0 %v416
    %418 = vmatprep.subr.mxu0 0.0
    %v419 = vand.u32 %v32, 4294901760
    %420 = vmatpush1.msra.mxu0 %v419
    %421 = vmatprep.subr.mxu0 0.0
    %v422 = vand.u32 %v33, 4294901760
    %423 = vmatpush1.msra.mxu0 %v422
    %424 = vmatprep.subr.mxu0 0.0
    %v425 = vand.u32 %v34, 4294901760
    %426 = vmatpush1.msra.mxu0 %v425
    %427 = vmatprep.subr.mxu0 0.0
    %v428 = vand.u32 %v35, 4294901760
    %429 = vmatpush1.msra.mxu0 %v428
    %430 = vmatprep.subr.mxu0 0.0
    %431 = vmatpush1.msra.mxu0 0.0
    %432 = vmatprep.subr.mxu0 0.0
    %433 = vmatpush1.msra.mxu0 0.0
    %434 = vmatprep.subr.mxu0 0.0
    %435 = vmatpush1.msra.mxu0 0.0
    %436 = vmatprep.subr.mxu0 0.0
    %437 = vmatpush1.msra.mxu0 0.0
    %438 = vmatprep.subr.mxu0 0.0
    %439 = vmatpush1.msra.mxu0 0.0
    %440 = vmatprep.subr.mxu0 0.0
    %441 = vmatpush1.msra.mxu0 0.0
    %442 = vmatprep.subr.mxu0 0.0
    %443 = vmatpush1.msra.mxu0 0.0
    %444 = vmatprep.subr.mxu0 0.0
    %445 = vmatpush1.msra.mxu0 0.0
    %446 = vmatprep.subr.mxu0 0.0
    %447 = vmatpush1.msra.mxu0 0.0
    %448 = vmatprep.subr.mxu0 0.0
    %449 = vmatpush1.msra.mxu0 0.0
    %450 = vmatprep.subr.mxu0 0.0
    %451 = vmatpush1.msra.mxu0 0.0
    %452 = vmatprep.subr.mxu0 0.0
    %453 = vmatpush1.msra.mxu0 0.0
    %454 = vmatprep.subr.mxu0 0.0
    %455 = vmatpush1.msra.mxu0 0.0
    %456 = vmatprep.subr.mxu0 0.0
    %457 = vmatpush1.msra.mxu0 0.0
    %458 = vmatprep.subr.mxu0 0.0
    %459 = vmatpush1.msra.mxu0 0.0
    %460 = vmatprep.subr.mxu0 0.0
    %461 = vmatpush1.msra.mxu0 0.0
    %462 = vmatprep.mubr.f32.mxu0 0.0
    %v463 = vand.u32 %v19, 4294901760
    %v464 = vsub.f32 %v19, %v463
    %v465 = vand.u32 %v464, 4294901760
    %466 = vmatmul.mubr.f32.gmra.mrb[0].mxu0 %v465
    %v467 = vpop.f32.mrb[0].mxu0
    %v468 = vadd.f32 %v379, %v467
    %v469 = vpop.f32.mrb[0].mxu0
    %470 = vdwg.mxu0
    %471 = vmatprep.subr.mxu0 0.0
    %v472 = vand.u32 %v20, 4294901760
    %v473 = vsub.f32 %v20, %v472
    %v474 = vand.u32 %v473, 4294901760
    %475 = vmatpush1.msra.mxu0 %v474
    %476 = vmatprep.subr.mxu0 0.0
    %v477 = vand.u32 %v21, 4294901760
    %v478 = vsub.f32 %v21, %v477
    %v479 = vand.u32 %v478, 4294901760
    %480 = vmatpush1.msra.mxu0 %v479
    %481 = vmatprep.subr.mxu0 0.0
    %v482 = vand.u32 %v22, 4294901760
    %v483 = vsub.f32 %v22, %v482
    %v484 = vand.u32 %v483, 4294901760
    %485 = vmatpush1.msra.mxu0 %v484
    %486 = vmatprep.subr.mxu0 0.0
    %v487 = vand.u32 %v23, 4294901760
    %v488 = vsub.f32 %v23, %v487
    %v489 = vand.u32 %v488, 4294901760
    %490 = vmatpush1.msra.mxu0 %v489
    %491 = vmatprep.subr.mxu0 0.0
    %v492 = vand.u32 %v24, 4294901760
    %v493 = vsub.f32 %v24, %v492
    %v494 = vand.u32 %v493, 4294901760
    %495 = vmatpush1.msra.mxu0 %v494
    %496 = vmatprep.subr.mxu0 0.0
    %v497 = vand.u32 %v25, 4294901760
    %v498 = vsub.f32 %v25, %v497
    %v499 = vand.u32 %v498, 4294901760
    %500 = vmatpush1.msra.mxu0 %v499
    %501 = vmatprep.subr.mxu0 0.0
    %v502 = vand.u32 %v26, 4294901760
    %v503 = vsub.f32 %v26, %v502
    %v504 = vand.u32 %v503, 4294901760
    %505 = vmatpush1.msra.mxu0 %v504
    %506 = vmatprep.subr.mxu0 0.0
    %v507 = vand.u32 %v27, 4294901760
    %v508 = vsub.f32 %v27, %v507
    %v509 = vand.u32 %v508, 4294901760
    %510 = vmatpush1.msra.mxu0 %v509
    %511 = vmatprep.subr.mxu0 0.0
    %v512 = vand.u32 %v28, 4294901760
    %v513 = vsub.f32 %v28, %v512
    %v514 = vand.u32 %v513, 4294901760
    %515 = vmatpush1.msra.mxu0 %v514
    %516 = vmatprep.subr.mxu0 0.0
    %v517 = vand.u32 %v29, 4294901760
    %v518 = vsub.f32 %v29, %v517
    %v519 = vand.u32 %v518, 4294901760
    %520 = vmatpush1.msra.mxu0 %v519
    %521 = vmatprep.subr.mxu0 0.0
    %v522 = vand.u32 %v30, 4294901760
    %v523 = vsub.f32 %v30, %v522
    %v524 = vand.u32 %v523, 4294901760
    %525 = vmatpush1.msra.mxu0 %v524
    %526 = vmatprep.subr.mxu0 0.0
    %v527 = vand.u32 %v31, 4294901760
    %v528 = vsub.f32 %v31, %v527
    %v529 = vand.u32 %v528, 4294901760
    %530 = vmatpush1.msra.mxu0 %v529
    %531 = vmatprep.subr.mxu0 0.0
    %v532 = vand.u32 %v32, 4294901760
    %v533 = vsub.f32 %v32, %v532
    %v534 = vand.u32 %v533, 4294901760
    %535 = vmatpush1.msra.mxu0 %v534
    %536 = vmatprep.subr.mxu0 0.0
    %v537 = vand.u32 %v33, 4294901760
    %v538 = vsub.f32 %v33, %v537
    %v539 = vand.u32 %v538, 4294901760
    %540 = vmatpush1.msra.mxu0 %v539
    %541 = vmatprep.subr.mxu0 0.0
    %v542 = vand.u32 %v34, 4294901760
    %v543 = vsub.f32 %v34, %v542
    %v544 = vand.u32 %v543, 4294901760
    %545 = vmatpush1.msra.mxu0 %v544
    %546 = vmatprep.subr.mxu0 0.0
    %v547 = vand.u32 %v35, 4294901760
    %v548 = vsub.f32 %v35, %v547
    %v549 = vand.u32 %v548, 4294901760
    %550 = vmatpush1.msra.mxu0 %v549
    %551 = vmatprep.subr.mxu0 0.0
    %552 = vmatpush1.msra.mxu0 0.0
    %553 = vmatprep.subr.mxu0 0.0
    %554 = vmatpush1.msra.mxu0 0.0
    %555 = vmatprep.subr.mxu0 0.0
    %556 = vmatpush1.msra.mxu0 0.0
    %557 = vmatprep.subr.mxu0 0.0
    %558 = vmatpush1.msra.mxu0 0.0
    %559 = vmatprep.subr.mxu0 0.0
    %560 = vmatpush1.msra.mxu0 0.0
    %561 = vmatprep.subr.mxu0 0.0
    %562 = vmatpush1.msra.mxu0 0.0
    %563 = vmatprep.subr.mxu0 0.0
    %564 = vmatpush1.msra.mxu0 0.0
    %565 = vmatprep.subr.mxu0 0.0
    %566 = vmatpush1.msra.mxu0 0.0
    %567 = vmatprep.subr.mxu0 0.0
    %568 = vmatpush1.msra.mxu0 0.0
    %569 = vmatprep.subr.mxu0 0.0
    %570 = vmatpush1.msra.mxu0 0.0
    %571 = vmatprep.subr.mxu0 0.0
    %572 = vmatpush1.msra.mxu0 0.0
    %573 = vmatprep.subr.mxu0 0.0
    %574 = vmatpush1.msra.mxu0 0.0
    %575 = vmatprep.subr.mxu0 0.0
    %576 = vmatpush1.msra.mxu0 0.0
    %577 = vmatprep.subr.mxu0 0.0
    %578 = vmatpush1.msra.mxu0 0.0
    %579 = vmatprep.subr.mxu0 0.0
    %580 = vmatpush1.msra.mxu0 0.0
    %581 = vmatprep.subr.mxu0 0.0
    %582 = vmatpush1.msra.mxu0 0.0
    %583 = vmatprep.mubr.f32.mxu0 0.0
    %v584 = vand.u32 %v19, 4294901760
    %585 = vmatmul.mubr.f32.gmra.mrb[0].mxu0 %v584
    %v586 = vpop.f32.mrb[0].mxu0
    %v587 = vadd.f32 %v468, %v586
    %v588 = vpop.f32.mrb[0].mxu0
    %589 = vdwg.mxu0
    %590 = vmatprep.subr.mxu0 0.0
    %v591 = vand.u32 %v20, 4294901760
    %592 = vmatpush1.msra.mxu0 %v591
    %593 = vmatprep.subr.mxu0 0.0
    %v594 = vand.u32 %v21, 4294901760
    %595 = vmatpush1.msra.mxu0 %v594
    %596 = vmatprep.subr.mxu0 0.0
    %v597 = vand.u32 %v22, 4294901760
    %598 = vmatpush1.msra.mxu0 %v597
    %599 = vmatprep.subr.mxu0 0.0
    %v600 = vand.u32 %v23, 4294901760
    %601 = vmatpush1.msra.mxu0 %v600
    %602 = vmatprep.subr.mxu0 0.0
    %v603 = vand.u32 %v24, 4294901760
    %604 = vmatpush1.msra.mxu0 %v603
    %605 = vmatprep.subr.mxu0 0.0
    %v606 = vand.u32 %v25, 4294901760
    %607 = vmatpush1.msra.mxu0 %v606
    %608 = vmatprep.subr.mxu0 0.0
    %v609 = vand.u32 %v26, 4294901760
    %610 = vmatpush1.msra.mxu0 %v609
    %611 = vmatprep.subr.mxu0 0.0
    %v612 = vand.u32 %v27, 4294901760
    %613 = vmatpush1.msra.mxu0 %v612
    %614 = vmatprep.subr.mxu0 0.0
    %v615 = vand.u32 %v28, 4294901760
    %616 = vmatpush1.msra.mxu0 %v615
    %617 = vmatprep.subr.mxu0 0.0
    %v618 = vand.u32 %v29, 4294901760
    %619 = vmatpush1.msra.mxu0 %v618
    %620 = vmatprep.subr.mxu0 0.0
    %v621 = vand.u32 %v30, 4294901760
    %622 = vmatpush1.msra.mxu0 %v621
    %623 = vmatprep.subr.mxu0 0.0
    %v624 = vand.u32 %v31, 4294901760
    %625 = vmatpush1.msra.mxu0 %v624
    %626 = vmatprep.subr.mxu0 0.0
    %v627 = vand.u32 %v32, 4294901760
    %628 = vmatpush1.msra.mxu0 %v627
    %629 = vmatprep.subr.mxu0 0.0
    %v630 = vand.u32 %v33, 4294901760
    %631 = vmatpush1.msra.mxu0 %v630
    %632 = vmatprep.subr.mxu0 0.0
    %v633 = vand.u32 %v34, 4294901760
    %634 = vmatpush1.msra.mxu0 %v633
    %635 = vmatprep.subr.mxu0 0.0
    %v636 = vand.u32 %v35, 4294901760
    %637 = vmatpush1.msra.mxu0 %v636
    %638 = vmatprep.subr.mxu0 0.0
    %639 = vmatpush1.msra.mxu0 0.0
    %640 = vmatprep.subr.mxu0 0.0
    %641 = vmatpush1.msra.mxu0 0.0
    %642 = vmatprep.subr.mxu0 0.0
    %643 = vmatpush1.msra.mxu0 0.0
    %644 = vmatprep.subr.mxu0 0.0
    %645 = vmatpush1.msra.mxu0 0.0
    %646 = vmatprep.subr.mxu0 0.0
    %647 = vmatpush1.msra.mxu0 0.0
    %648 = vmatprep.subr.mxu0 0.0
    %649 = vmatpush1.msra.mxu0 0.0
    %650 = vmatprep.subr.mxu0 0.0
    %651 = vmatpush1.msra.mxu0 0.0
    %652 = vmatprep.subr.mxu0 0.0
    %653 = vmatpush1.msra.mxu0 0.0
    %654 = vmatprep.subr.mxu0 0.0
    %655 = vmatpush1.msra.mxu0 0.0
    %656 = vmatprep.subr.mxu0 0.0
    %657 = vmatpush1.msra.mxu0 0.0
    %658 = vmatprep.subr.mxu0 0.0
    %659 = vmatpush1.msra.mxu0 0.0
    %660 = vmatprep.subr.mxu0 0.0
    %661 = vmatpush1.msra.mxu0 0.0
    %662 = vmatprep.subr.mxu0 0.0
    %663 = vmatpush1.msra.mxu0 0.0
    %664 = vmatprep.subr.mxu0 0.0
    %665 = vmatpush1.msra.mxu0 0.0
    %666 = vmatprep.subr.mxu0 0.0
    %667 = vmatpush1.msra.mxu0 0.0
    %668 = vmatprep.subr.mxu0 0.0
    %669 = vmatpush1.msra.mxu0 0.0
    %670 = vmatprep.mubr.f32.mxu0 0.0
    %v671 = vand.u32 %v19, 4294901760
    %672 = vmatmul.mubr.f32.gmra.mrb[0].mxu0 %v671
    %v673 = vpop.f32.mrb[0].mxu0
    %v674 = vadd.f32 %v587, %v673
    %v675 = vpop.f32.mrb[0].mxu0
    %676 = vdwg.mxu0
    %v677 = vrsqrt.pop %v674
    %v678 = vmul.f32 %v674, %v677
    %vm679 = vcmp.eq.f32.partialorder %v674, inf
    %v680 = vsel %vm679, %v674, %v678
    %vm681 = vcmp.eq.f32.partialorder %v674, 0.0
    %v682 = vand.u32 %v674, 2147483648
    %v683 = vsel %vm681, %v682, %v680
    %v684 = vmax.f32 %v683, 1e-08
    %v685 = vrcp.pop %v684
    %v686 = vmul.f32 1.0, %v685
    %v687 = vld [vmem:[%s3] sm:$0xf]
    %vm688 = vcmask 31744
    %v690 = vsel %vm688, %v686, 0
    %vm692 = vcmask 1043456
    %v694 = vsel %vm692, %v687, 0
    %696 = vmatprep.subr.mxu0 0.0
    %v697 = vand.u32 %v694, 4294901760
    %698 = vmatpush1.msra.mxu0 %v697
    %699 = vmatprep.subr.mxu0 0.0
    %700 = vmatpush1.msra.mxu0 0.0
    %701 = vmatprep.subr.mxu0 0.0
    %702 = vmatpush1.msra.mxu0 0.0
    %703 = vmatprep.subr.mxu0 0.0
    %704 = vmatpush1.msra.mxu0 0.0
    %705 = vmatprep.subr.mxu0 0.0
    %706 = vmatpush1.msra.mxu0 0.0
    %707 = vmatprep.subr.mxu0 0.0
    %708 = vmatpush1.msra.mxu0 0.0
    %709 = vmatprep.subr.mxu0 0.0
    %710 = vmatpush1.msra.mxu0 0.0
    %711 = vmatprep.subr.mxu0 0.0
    %712 = vmatpush1.msra.mxu0 0.0
    %713 = vmatprep.subr.mxu0 0.0
    %714 = vmatpush1.msra.mxu0 0.0
    %715 = vmatprep.subr.mxu0 0.0
    %716 = vmatpush1.msra.mxu0 0.0
    %717 = vmatprep.subr.mxu0 0.0
    %718 = vmatpush1.msra.mxu0 0.0
    %719 = vmatprep.subr.mxu0 0.0
    %720 = vmatpush1.msra.mxu0 0.0
    %721 = vmatprep.subr.mxu0 0.0
    %722 = vmatpush1.msra.mxu0 0.0
    %723 = vmatprep.subr.mxu0 0.0
    %724 = vmatpush1.msra.mxu0 0.0
    %725 = vmatprep.subr.mxu0 0.0
    %726 = vmatpush1.msra.mxu0 0.0
    %727 = vmatprep.subr.mxu0 0.0
    %728 = vmatpush1.msra.mxu0 0.0
    %729 = vmatprep.subr.mxu0 0.0
    %730 = vmatpush1.msra.mxu0 0.0
    %731 = vmatprep.subr.mxu0 0.0
    %732 = vmatpush1.msra.mxu0 0.0
    %733 = vmatprep.subr.mxu0 0.0
    %734 = vmatpush1.msra.mxu0 0.0
    %735 = vmatprep.subr.mxu0 0.0
    %736 = vmatpush1.msra.mxu0 0.0
    %737 = vmatprep.subr.mxu0 0.0
    %738 = vmatpush1.msra.mxu0 0.0
    %739 = vmatprep.subr.mxu0 0.0
    %740 = vmatpush1.msra.mxu0 0.0
    %741 = vmatprep.subr.mxu0 0.0
    %742 = vmatpush1.msra.mxu0 0.0
    %743 = vmatprep.subr.mxu0 0.0
    %744 = vmatpush1.msra.mxu0 0.0
    %745 = vmatprep.subr.mxu0 0.0
    %746 = vmatpush1.msra.mxu0 0.0
    %747 = vmatprep.subr.mxu0 0.0
    %748 = vmatpush1.msra.mxu0 0.0
    %749 = vmatprep.subr.mxu0 0.0
    %750 = vmatpush1.msra.mxu0 0.0
    %751 = vmatprep.subr.mxu0 0.0
    %752 = vmatpush1.msra.mxu0 0.0
    %753 = vmatprep.subr.mxu0 0.0
    %754 = vmatpush1.msra.mxu0 0.0
    %755 = vmatprep.subr.mxu0 0.0
    %756 = vmatpush1.msra.mxu0 0.0
    %757 = vmatprep.subr.mxu0 0.0
    %758 = vmatpush1.msra.mxu0 0.0
    %759 = vmatprep.subr.mxu0 0.0
    %760 = vmatpush1.msra.mxu0 0.0
    %761 = vmatprep.mubr.f32.mxu0 0.0
    %v762 = vand.u32 %v690, 4294901760
    %v763 = vsub.f32 %v690, %v762
    %v764 = vand.u32 %v763, 4294901760
    %v765 = vsub.f32 %v763, %v764
    %v766 = vand.u32 %v765, 4294901760
    %767 = vmatmul.mubr.f32.gmra.mrb[0].mxu0 %v766
    %v768 = vpop.f32.mrb[0].mxu0
    %v769 = vadd.f32 0.0, %v768
    %v770 = vpop.f32.mrb[0].mxu0
    %771 = vdwg.mxu0
    %772 = vmatprep.subr.mxu0 0.0
    %v773 = vand.u32 %v694, 4294901760
    %v774 = vsub.f32 %v694, %v773
    %v775 = vand.u32 %v774, 4294901760
    %v776 = vsub.f32 %v774, %v775
    %v777 = vand.u32 %v776, 4294901760
    %778 = vmatpush1.msra.mxu0 %v777
    %779 = vmatprep.subr.mxu0 0.0
    %780 = vmatpush1.msra.mxu0 0.0
    %781 = vmatprep.subr.mxu0 0.0
    %782 = vmatpush1.msra.mxu0 0.0
    %783 = vmatprep.subr.mxu0 0.0
    %784 = vmatpush1.msra.mxu0 0.0
    %785 = vmatprep.subr.mxu0 0.0
    %786 = vmatpush1.msra.mxu0 0.0
    %787 = vmatprep.subr.mxu0 0.0
    %788 = vmatpush1.msra.mxu0 0.0
    %789 = vmatprep.subr.mxu0 0.0
    %790 = vmatpush1.msra.mxu0 0.0
    %791 = vmatprep.subr.mxu0 0.0
    %792 = vmatpush1.msra.mxu0 0.0
    %793 = vmatprep.subr.mxu0 0.0
    %794 = vmatpush1.msra.mxu0 0.0
    %795 = vmatprep.subr.mxu0 0.0
    %796 = vmatpush1.msra.mxu0 0.0
    %797 = vmatprep.subr.mxu0 0.0
    %798 = vmatpush1.msra.mxu0 0.0
    %799 = vmatprep.subr.mxu0 0.0
    %800 = vmatpush1.msra.mxu0 0.0
    %801 = vmatprep.subr.mxu0 0.0
    %802 = vmatpush1.msra.mxu0 0.0
    %803 = vmatprep.subr.mxu0 0.0
    %804 = vmatpush1.msra.mxu0 0.0
    %805 = vmatprep.subr.mxu0 0.0
    %806 = vmatpush1.msra.mxu0 0.0
    %807 = vmatprep.subr.mxu0 0.0
    %808 = vmatpush1.msra.mxu0 0.0
    %809 = vmatprep.subr.mxu0 0.0
    %810 = vmatpush1.msra.mxu0 0.0
    %811 = vmatprep.subr.mxu0 0.0
    %812 = vmatpush1.msra.mxu0 0.0
    %813 = vmatprep.subr.mxu0 0.0
    %814 = vmatpush1.msra.mxu0 0.0
    %815 = vmatprep.subr.mxu0 0.0
    %816 = vmatpush1.msra.mxu0 0.0
    %817 = vmatprep.subr.mxu0 0.0
    %818 = vmatpush1.msra.mxu0 0.0
    %819 = vmatprep.subr.mxu0 0.0
    %820 = vmatpush1.msra.mxu0 0.0
    %821 = vmatprep.subr.mxu0 0.0
    %822 = vmatpush1.msra.mxu0 0.0
    %823 = vmatprep.subr.mxu0 0.0
    %824 = vmatpush1.msra.mxu0 0.0
    %825 = vmatprep.subr.mxu0 0.0
    %826 = vmatpush1.msra.mxu0 0.0
    %827 = vmatprep.subr.mxu0 0.0
    %828 = vmatpush1.msra.mxu0 0.0
    %829 = vmatprep.subr.mxu0 0.0
    %830 = vmatpush1.msra.mxu0 0.0
    %831 = vmatprep.subr.mxu0 0.0
    %832 = vmatpush1.msra.mxu0 0.0
    %833 = vmatprep.subr.mxu0 0.0
    %834 = vmatpush1.msra.mxu0 0.0
    %835 = vmatprep.subr.mxu0 0.0
    %836 = vmatpush1.msra.mxu0 0.0
    %837 = vmatprep.subr.mxu0 0.0
    %838 = vmatpush1.msra.mxu0 0.0
    %839 = vmatprep.subr.mxu0 0.0
    %840 = vmatpush1.msra.mxu0 0.0
    %841 = vmatprep.mubr.f32.mxu0 0.0
    %v842 = vand.u32 %v690, 4294901760
    %843 = vmatmul.mubr.f32.gmra.mrb[0].mxu0 %v842
    %v844 = vpop.f32.mrb[0].mxu0
    %v845 = vadd.f32 %v769, %v844
    %v846 = vpop.f32.mrb[0].mxu0
    %847 = vdwg.mxu0
    %848 = vmatprep.subr.mxu0 0.0
    %v849 = vand.u32 %v694, 4294901760
    %v850 = vsub.f32 %v694, %v849
    %851 = vmatpush1.msra.mxu0 %v850
    %852 = vmatprep.subr.mxu0 0.0
    %853 = vmatpush1.msra.mxu0 0.0
    %854 = vmatprep.subr.mxu0 0.0
    %855 = vmatpush1.msra.mxu0 0.0
    %856 = vmatprep.subr.mxu0 0.0
    %857 = vmatpush1.msra.mxu0 0.0
    %858 = vmatprep.subr.mxu0 0.0
    %859 = vmatpush1.msra.mxu0 0.0
    %860 = vmatprep.subr.mxu0 0.0
    %861 = vmatpush1.msra.mxu0 0.0
    %862 = vmatprep.subr.mxu0 0.0
    %863 = vmatpush1.msra.mxu0 0.0
    %864 = vmatprep.subr.mxu0 0.0
    %865 = vmatpush1.msra.mxu0 0.0
    %866 = vmatprep.subr.mxu0 0.0
    %867 = vmatpush1.msra.mxu0 0.0
    %868 = vmatprep.subr.mxu0 0.0
    %869 = vmatpush1.msra.mxu0 0.0
    %870 = vmatprep.subr.mxu0 0.0
    %871 = vmatpush1.msra.mxu0 0.0
    %872 = vmatprep.subr.mxu0 0.0
    %873 = vmatpush1.msra.mxu0 0.0
    %874 = vmatprep.subr.mxu0 0.0
    %875 = vmatpush1.msra.mxu0 0.0
    %876 = vmatprep.subr.mxu0 0.0
    %877 = vmatpush1.msra.mxu0 0.0
    %878 = vmatprep.subr.mxu0 0.0
    %879 = vmatpush1.msra.mxu0 0.0
    %880 = vmatprep.subr.mxu0 0.0
    %881 = vmatpush1.msra.mxu0 0.0
    %882 = vmatprep.subr.mxu0 0.0
    %883 = vmatpush1.msra.mxu0 0.0
    %884 = vmatprep.subr.mxu0 0.0
    %885 = vmatpush1.msra.mxu0 0.0
    %886 = vmatprep.subr.mxu0 0.0
    %887 = vmatpush1.msra.mxu0 0.0
    %888 = vmatprep.subr.mxu0 0.0
    %889 = vmatpush1.msra.mxu0 0.0
    %890 = vmatprep.subr.mxu0 0.0
    %891 = vmatpush1.msra.mxu0 0.0
    %892 = vmatprep.subr.mxu0 0.0
    %893 = vmatpush1.msra.mxu0 0.0
    %894 = vmatprep.subr.mxu0 0.0
    %895 = vmatpush1.msra.mxu0 0.0
    %896 = vmatprep.subr.mxu0 0.0
    %897 = vmatpush1.msra.mxu0 0.0
    %898 = vmatprep.subr.mxu0 0.0
    %899 = vmatpush1.msra.mxu0 0.0
    %900 = vmatprep.subr.mxu0 0.0
    %901 = vmatpush1.msra.mxu0 0.0
    %902 = vmatprep.subr.mxu0 0.0
    %903 = vmatpush1.msra.mxu0 0.0
    %904 = vmatprep.subr.mxu0 0.0
    %905 = vmatpush1.msra.mxu0 0.0
    %906 = vmatprep.subr.mxu0 0.0
    %907 = vmatpush1.msra.mxu0 0.0
    %908 = vmatprep.subr.mxu0 0.0
    %909 = vmatpush1.msra.mxu0 0.0
    %910 = vmatprep.subr.mxu0 0.0
    %911 = vmatpush1.msra.mxu0 0.0
    %912 = vmatprep.subr.mxu0 0.0
    %913 = vmatpush1.msra.mxu0 0.0
    %914 = vmatprep.mubr.f32.mxu0 0.0
    %v915 = vand.u32 %v690, 4294901760
    %v916 = vsub.f32 %v690, %v915
    %917 = vmatmul.mubr.f32.gmra.mrb[0].mxu0 %v916
    %v918 = vpop.f32.mrb[0].mxu0
    %v919 = vadd.f32 %v845, %v918
    %v920 = vpop.f32.mrb[0].mxu0
    %921 = vdwg.mxu0
    %922 = vmatprep.subr.mxu0 0.0
    %v923 = vand.u32 %v694, 4294901760
    %924 = vmatpush1.msra.mxu0 %v923
    %925 = vmatprep.subr.mxu0 0.0
    %926 = vmatpush1.msra.mxu0 0.0
    %927 = vmatprep.subr.mxu0 0.0
    %928 = vmatpush1.msra.mxu0 0.0
    %929 = vmatprep.subr.mxu0 0.0
    %930 = vmatpush1.msra.mxu0 0.0
    %931 = vmatprep.subr.mxu0 0.0
    %932 = vmatpush1.msra.mxu0 0.0
    %933 = vmatprep.subr.mxu0 0.0
    %934 = vmatpush1.msra.mxu0 0.0
    %935 = vmatprep.subr.mxu0 0.0
    %936 = vmatpush1.msra.mxu0 0.0
    %937 = vmatprep.subr.mxu0 0.0
    %938 = vmatpush1.msra.mxu0 0.0
    %939 = vmatprep.subr.mxu0 0.0
    %940 = vmatpush1.msra.mxu0 0.0
    %941 = vmatprep.subr.mxu0 0.0
    %942 = vmatpush1.msra.mxu0 0.0
    %943 = vmatprep.subr.mxu0 0.0
    %944 = vmatpush1.msra.mxu0 0.0
    %945 = vmatprep.subr.mxu0 0.0
    %946 = vmatpush1.msra.mxu0 0.0
    %947 = vmatprep.subr.mxu0 0.0
    %948 = vmatpush1.msra.mxu0 0.0
    %949 = vmatprep.subr.mxu0 0.0
    %950 = vmatpush1.msra.mxu0 0.0
    %951 = vmatprep.subr.mxu0 0.0
    %952 = vmatpush1.msra.mxu0 0.0
    %953 = vmatprep.subr.mxu0 0.0
    %954 = vmatpush1.msra.mxu0 0.0
    %955 = vmatprep.subr.mxu0 0.0
    %956 = vmatpush1.msra.mxu0 0.0
    %957 = vmatprep.subr.mxu0 0.0
    %958 = vmatpush1.msra.mxu0 0.0
    %959 = vmatprep.subr.mxu0 0.0
    %960 = vmatpush1.msra.mxu0 0.0
    %961 = vmatprep.subr.mxu0 0.0
    %962 = vmatpush1.msra.mxu0 0.0
    %963 = vmatprep.subr.mxu0 0.0
    %964 = vmatpush1.msra.mxu0 0.0
    %965 = vmatprep.subr.mxu0 0.0
    %966 = vmatpush1.msra.mxu0 0.0
    %967 = vmatprep.subr.mxu0 0.0
    %968 = vmatpush1.msra.mxu0 0.0
    %969 = vmatprep.subr.mxu0 0.0
    %970 = vmatpush1.msra.mxu0 0.0
    %971 = vmatprep.subr.mxu0 0.0
    %972 = vmatpush1.msra.mxu0 0.0
    %973 = vmatprep.subr.mxu0 0.0
    %974 = vmatpush1.msra.mxu0 0.0
    %975 = vmatprep.subr.mxu0 0.0
    %976 = vmatpush1.msra.mxu0 0.0
    %977 = vmatprep.subr.mxu0 0.0
    %978 = vmatpush1.msra.mxu0 0.0
    %979 = vmatprep.subr.mxu0 0.0
    %980 = vmatpush1.msra.mxu0 0.0
    %981 = vmatprep.subr.mxu0 0.0
    %982 = vmatpush1.msra.mxu0 0.0
    %983 = vmatprep.subr.mxu0 0.0
    %984 = vmatpush1.msra.mxu0 0.0
    %985 = vmatprep.subr.mxu0 0.0
    %986 = vmatpush1.msra.mxu0 0.0
    %987 = vmatprep.mubr.f32.mxu0 0.0
    %v988 = vand.u32 %v690, 4294901760
    %v989 = vsub.f32 %v690, %v988
    %v990 = vand.u32 %v989, 4294901760
    %991 = vmatmul.mubr.f32.gmra.mrb[0].mxu0 %v990
    %v992 = vpop.f32.mrb[0].mxu0
    %v993 = vadd.f32 %v919, %v992
    %v994 = vpop.f32.mrb[0].mxu0
    %995 = vdwg.mxu0
    %996 = vmatprep.subr.mxu0 0.0
    %v997 = vand.u32 %v694, 4294901760
    %v998 = vsub.f32 %v694, %v997
    %v999 = vand.u32 %v998, 4294901760
    %1000 = vmatpush1.msra.mxu0 %v999
    %1001 = vmatprep.subr.mxu0 0.0
    %1002 = vmatpush1.msra.mxu0 0.0
    %1003 = vmatprep.subr.mxu0 0.0
    %1004 = vmatpush1.msra.mxu0 0.0
    %1005 = vmatprep.subr.mxu0 0.0
    %1006 = vmatpush1.msra.mxu0 0.0
    %1007 = vmatprep.subr.mxu0 0.0
    %1008 = vmatpush1.msra.mxu0 0.0
    %1009 = vmatprep.subr.mxu0 0.0
    %1010 = vmatpush1.msra.mxu0 0.0
    %1011 = vmatprep.subr.mxu0 0.0
    %1012 = vmatpush1.msra.mxu0 0.0
    %1013 = vmatprep.subr.mxu0 0.0
    %1014 = vmatpush1.msra.mxu0 0.0
    %1015 = vmatprep.subr.mxu0 0.0
    %1016 = vmatpush1.msra.mxu0 0.0
    %1017 = vmatprep.subr.mxu0 0.0
    %1018 = vmatpush1.msra.mxu0 0.0
    %1019 = vmatprep.subr.mxu0 0.0
    %1020 = vmatpush1.msra.mxu0 0.0
    %1021 = vmatprep.subr.mxu0 0.0
    %1022 = vmatpush1.msra.mxu0 0.0
    %1023 = vmatprep.subr.mxu0 0.0
    %1024 = vmatpush1.msra.mxu0 0.0
    %1025 = vmatprep.subr.mxu0 0.0
    %1026 = vmatpush1.msra.mxu0 0.0
    %1027 = vmatprep.subr.mxu0 0.0
    %1028 = vmatpush1.msra.mxu0 0.0
    %1029 = vmatprep.subr.mxu0 0.0
    %1030 = vmatpush1.msra.mxu0 0.0
    %1031 = vmatprep.subr.mxu0 0.0
    %1032 = vmatpush1.msra.mxu0 0.0
    %1033 = vmatprep.subr.mxu0 0.0
    %1034 = vmatpush1.msra.mxu0 0.0
    %1035 = vmatprep.subr.mxu0 0.0
    %1036 = vmatpush1.msra.mxu0 0.0
    %1037 = vmatprep.subr.mxu0 0.0
    %1038 = vmatpush1.msra.mxu0 0.0
    %1039 = vmatprep.subr.mxu0 0.0
    %1040 = vmatpush1.msra.mxu0 0.0
    %1041 = vmatprep.subr.mxu0 0.0
    %1042 = vmatpush1.msra.mxu0 0.0
    %1043 = vmatprep.subr.mxu0 0.0
    %1044 = vmatpush1.msra.mxu0 0.0
    %1045 = vmatprep.subr.mxu0 0.0
    %1046 = vmatpush1.msra.mxu0 0.0
    %1047 = vmatprep.subr.mxu0 0.0
    %1048 = vmatpush1.msra.mxu0 0.0
    %1049 = vmatprep.subr.mxu0 0.0
    %1050 = vmatpush1.msra.mxu0 0.0
    %1051 = vmatprep.subr.mxu0 0.0
    %1052 = vmatpush1.msra.mxu0 0.0
    %1053 = vmatprep.subr.mxu0 0.0
    %1054 = vmatpush1.msra.mxu0 0.0
    %1055 = vmatprep.subr.mxu0 0.0
    %1056 = vmatpush1.msra.mxu0 0.0
    %1057 = vmatprep.subr.mxu0 0.0
    %1058 = vmatpush1.msra.mxu0 0.0
    %1059 = vmatprep.subr.mxu0 0.0
    %1060 = vmatpush1.msra.mxu0 0.0
    %1061 = vmatprep.subr.mxu0 0.0
    %1062 = vmatpush1.msra.mxu0 0.0
    %1063 = vmatprep.mubr.f32.mxu0 0.0
    %v1064 = vand.u32 %v690, 4294901760
    %1065 = vmatmul.mubr.f32.gmra.mrb[0].mxu0 %v1064
    %v1066 = vpop.f32.mrb[0].mxu0
    %v1067 = vadd.f32 %v993, %v1066
    %v1068 = vpop.f32.mrb[0].mxu0
    %1069 = vdwg.mxu0
    %1070 = vmatprep.subr.mxu0 0.0
    %v1071 = vand.u32 %v694, 4294901760
    %1072 = vmatpush1.msra.mxu0 %v1071
    %1073 = vmatprep.subr.mxu0 0.0
    %1074 = vmatpush1.msra.mxu0 0.0
    %1075 = vmatprep.subr.mxu0 0.0
    %1076 = vmatpush1.msra.mxu0 0.0
    %1077 = vmatprep.subr.mxu0 0.0
    %1078 = vmatpush1.msra.mxu0 0.0
    %1079 = vmatprep.subr.mxu0 0.0
    %1080 = vmatpush1.msra.mxu0 0.0
    %1081 = vmatprep.subr.mxu0 0.0
    %1082 = vmatpush1.msra.mxu0 0.0
    %1083 = vmatprep.subr.mxu0 0.0
    %1084 = vmatpush1.msra.mxu0 0.0
    %1085 = vmatprep.subr.mxu0 0.0
    %1086 = vmatpush1.msra.mxu0 0.0
    %1087 = vmatprep.subr.mxu0 0.0
    %1088 = vmatpush1.msra.mxu0 0.0
    %1089 = vmatprep.subr.mxu0 0.0
    %1090 = vmatpush1.msra.mxu0 0.0
    %1091 = vmatprep.subr.mxu0 0.0
    %1092 = vmatpush1.msra.mxu0 0.0
    %1093 = vmatprep.subr.mxu0 0.0
    %1094 = vmatpush1.msra.mxu0 0.0
    %1095 = vmatprep.subr.mxu0 0.0
    %1096 = vmatpush1.msra.mxu0 0.0
    %1097 = vmatprep.subr.mxu0 0.0
    %1098 = vmatpush1.msra.mxu0 0.0
    %1099 = vmatprep.subr.mxu0 0.0
    %1100 = vmatpush1.msra.mxu0 0.0
    %1101 = vmatprep.subr.mxu0 0.0
    %1102 = vmatpush1.msra.mxu0 0.0
    %1103 = vmatprep.subr.mxu0 0.0
    %1104 = vmatpush1.msra.mxu0 0.0
    %1105 = vmatprep.subr.mxu0 0.0
    %1106 = vmatpush1.msra.mxu0 0.0
    %1107 = vmatprep.subr.mxu0 0.0
    %1108 = vmatpush1.msra.mxu0 0.0
    %1109 = vmatprep.subr.mxu0 0.0
    %1110 = vmatpush1.msra.mxu0 0.0
    %1111 = vmatprep.subr.mxu0 0.0
    %1112 = vmatpush1.msra.mxu0 0.0
    %1113 = vmatprep.subr.mxu0 0.0
    %1114 = vmatpush1.msra.mxu0 0.0
    %1115 = vmatprep.subr.mxu0 0.0
    %1116 = vmatpush1.msra.mxu0 0.0
    %1117 = vmatprep.subr.mxu0 0.0
    %1118 = vmatpush1.msra.mxu0 0.0
    %1119 = vmatprep.subr.mxu0 0.0
    %1120 = vmatpush1.msra.mxu0 0.0
    %1121 = vmatprep.subr.mxu0 0.0
    %1122 = vmatpush1.msra.mxu0 0.0
    %1123 = vmatprep.subr.mxu0 0.0
    %1124 = vmatpush1.msra.mxu0 0.0
    %1125 = vmatprep.subr.mxu0 0.0
    %1126 = vmatpush1.msra.mxu0 0.0
    %1127 = vmatprep.subr.mxu0 0.0
    %1128 = vmatpush1.msra.mxu0 0.0
    %1129 = vmatprep.subr.mxu0 0.0
    %1130 = vmatpush1.msra.mxu0 0.0
    %1131 = vmatprep.subr.mxu0 0.0
    %1132 = vmatpush1.msra.mxu0 0.0
    %1133 = vmatprep.subr.mxu0 0.0
    %1134 = vmatpush1.msra.mxu0 0.0
    %1135 = vmatprep.mubr.f32.mxu0 0.0
    %v1136 = vand.u32 %v690, 4294901760
    %1137 = vmatmul.mubr.f32.gmra.mrb[0].mxu0 %v1136
    %v1138 = vpop.f32.mrb[0].mxu0
    %v1139 = vadd.f32 %v1067, %v1138
    %v1140 = vpop.f32.mrb[0].mxu0
    %1141 = vdwg.mxu0
    %v1142 = vmul.f32 %v18, %v1139
    %v1143 = vld [vmem:[%s1] sm:$0x1]
    %v1145 = vlaneseq
    %v1146 = vshrl.u32 %v1145, 7
    %v1147 = vsub.s32 0, %v1146
    %v1148 = vrot.slane %v1143, %v1147
    %v1150 = vmul.f32 %v1142, %v1148
    %1151 = vst [vmem:[#allocation2] sm:$0xf] %v1150
    // Predicated region
    $region18: #{tpu_custom_call.1} parent=1 // pred_check
      _
    $region19: #{tpu_custom_call.1} parent=1 // pred_check_branch
      %1153 = sbr.rel (0) target = $region21
    $region20: #{tpu_custom_call.1} parent=1 // pred_region
      %s1155 = ssub.s32 64, 64
      %1156 = vsyncadd [#allocation3], %s1155
      %s1158 = sshll.u32 [#allocation2], 4
      %s1159 = int_to_ptr.vmem [resolvable:$true] %s1158
      %1161 = dma.vmem_to_hbm [thread:$0]  %s1159, 64, %s4, [#allocation3]
    $region21: #{tpu_custom_call.1} parent=1 // pred_fallthru
      _
    // Predicated region
    $region22: #{tpu_custom_call.1} parent=1 // pred_check
      _
    $region23: #{tpu_custom_call.1} parent=1 // pred_check_branch
      %1163 = sbr.rel (0) target = $region25
    $region24: #{tpu_custom_call.1} parent=1 // pred_region
      %1164 = dma.done [#allocation3], 64
    $region25: #{tpu_custom_call.1} parent=1 // pred_fallthru
      _
    %1165 = vsyncpa [#allocation3], 1

</llo_original>
